<compile_context>
chip_gen: v5e
topology: v5e:2x2
jax: 0.10.0
libtpu: 0.0.40
codegen_flags: <defaults>
</compile_context>

<pallas_src>
import functools
import numpy as np
import jax
import jax.numpy as jnp
from jax.experimental import pallas as pl
from jax.experimental.pallas import tpu as pltpu


# ----------------------------------------------------------------------------
# Parameter construction (deterministic, PyTorch-default-style uniform init).
# Weights are kept in PyTorch [out, in] form; biases as 1-D [out].
# ----------------------------------------------------------------------------
def _init_linear(key, in_dim, out_dim, bias=True):
    k1, k2 = jax.random.split(key)
    bound = 1.0 / np.sqrt(in_dim)
    w = jax.random.uniform(k1, (out_dim, in_dim), jnp.float32, -bound, bound)
    if bias:
        b = jax.random.uniform(k2, (out_dim,), jnp.float32, -bound, bound)
        return w, b
    return w


def _linspace(backcast_length, forecast_length):
    lin = np.linspace(
        -backcast_length,
        forecast_length,
        backcast_length + forecast_length,
        dtype=np.float32,
    )
    return lin[:backcast_length], lin[backcast_length:]


def build_nbeats_blocks(
    key,
    prediction_length,
    context_length,
    num_stacks,
    widths,
    num_blocks,
    num_block_layers,
    expansion_coefficient_lengths,
    stack_types,
):
    blocks = []
    for sid in range(num_stacks):
        for _ in range(num_blocks[sid]):
            key, bkey = jax.random.split(key)
            units = widths[sid]
            n_layers = num_block_layers[sid]
            stype = stack_types[sid]
            keys = jax.random.split(bkey, n_layers + 4)

            # fc stack: Linear(ctx, units) + (n_layers-1) x Linear(units, units)
            fc = [_init_linear(keys[0], context_length, units)]
            for li in range(1, n_layers):
                fc.append(_init_linear(keys[li], units, units))

            if stype == "G":
                td = expansion_coefficient_lengths[sid]
                thb_w = _init_linear(keys[n_layers], units, td, bias=False)
                thf_w = _init_linear(keys[n_layers + 1], units, td, bias=False)
                back_w, back_b = _init_linear(keys[n_layers + 2], td, context_length)
                fore_w, fore_b = _init_linear(keys[n_layers + 3], td, prediction_length)
                blocks.append(
                    dict(kind="G", units=units, thetas_dim=td, fc=fc,
                         thb_w=thb_w, thf_w=thf_w,
                         back_w=back_w, back_b=back_b,
                         fore_w=fore_w, fore_b=fore_b)
                )
            else:
                b_ls, f_ls = _linspace(context_length, prediction_length)
                if stype == "S":
                    td = prediction_length  # nb_harmonics=None path
                    p1 = td // 2
                    p2 = td // 2 + (td % 2)
                    s_back = np.concatenate(
                        [np.stack([np.cos(2 * np.pi * i * b_ls) for i in range(p1)]),
                         np.stack([np.sin(2 * np.pi * i * b_ls) for i in range(p2)])]
                    ).astype(np.float32)
                    s_fore = np.concatenate(
                        [np.stack([np.cos(2 * np.pi * i * f_ls) for i in range(p1)]),
                         np.stack([np.sin(2 * np.pi * i * f_ls) for i in range(p2)])]
                    ).astype(np.float32)
                else:  # 'T' trend block
                    td = expansion_coefficient_lengths[sid]
                    s_back = np.stack([b_ls ** i for i in range(td)]).astype(np.float32)
                    s_fore = np.stack([f_ls ** i for i in range(td)]).astype(np.float32)
                theta_w = _init_linear(keys[n_layers], units, td, bias=False)
                blocks.append(
                    dict(kind=stype, units=units, thetas_dim=td, fc=fc,
                         theta_w=theta_w,
                         s_back=jnp.asarray(s_back), s_fore=jnp.asarray(s_fore))
                )
    return blocks


# ----------------------------------------------------------------------------
# Pack per-block params into a few zero-padded slabs + static metadata.
# Kernel layout: activations [feature, batch] (batch on lanes), weights applied
# as out = W @ h.  Weight slabs in bf16, biases in f32.
# ----------------------------------------------------------------------------
def pack_nbeats_params(blocks, context_length, prediction_length):
    ctx, pred = context_length, prediction_length
    cp = ctx + pred
    u_max = max(b["units"] for b in blocks)
    in_max = max(ctx, u_max)
    g_blks = [b for b in blocks if b["kind"] == "G"]
    th_g = max((b["thetas_dim"] for b in g_blks), default=1)

    fc_w_list, fc_b_list = [], []
    g_proj, g_basis, g_bias = [], [], []
    st_basis = []
    meta = []
    fc_count = 0

    for blk in blocks:
        units = blk["units"]
        td = blk["thetas_dim"]
        for (w, b) in blk["fc"]:
            out_d, in_d = w.shape
            wpad = np.zeros((u_max, in_max), np.float32)
            wpad[:out_d, :in_d] = np.asarray(w)
            bpad = np.zeros((u_max, 1), np.float32)
            bpad[:out_d, 0] = np.asarray(b)
            fc_w_list.append(wpad)
            fc_b_list.append(bpad)

        if blk["kind"] == "G":
            # stacked theta projection: rows [0:td]=theta_b, [th_g:th_g+td]=theta_f
            p = np.zeros((2 * th_g, u_max), np.float32)
            p[:td, :units] = np.asarray(blk["thb_w"])
            p[th_g:th_g + td, :units] = np.asarray(blk["thf_w"])
            # block-diagonal basis: [ctx+pred, 2*th_g]
            bas = np.zeros((cp, 2 * th_g), np.float32)
            bas[:ctx, :td] = np.asarray(blk["back_w"])          # [ctx, td]
            bas[ctx:, th_g:th_g + td] = np.asarray(blk["fore_w"])  # [pred, td]
            bia = np.zeros((cp, 1), np.float32)
            bia[:ctx, 0] = np.asarray(blk["back_b"])
            bia[ctx:, 0] = np.asarray(blk["fore_b"])
            meta.append(dict(kind="G", fc_start=fc_count, n_fc=len(blk["fc"]),
                             slab_idx=len(g_proj)))
            g_proj.append(p)
            g_basis.append(bas)
            g_bias.append(bia)
        else:
            # fold theta projection into the basis (exact: linear chain)
            theta_w = np.asarray(blk["theta_w"])                # [td, units]
            bb = np.asarray(blk["s_back"]).T @ theta_w          # [ctx, units]
            bf = np.asarray(blk["s_fore"]).T @ theta_w          # [pred, units]
            bas = np.zeros((cp, u_max), np.float32)
            bas[:ctx, :units] = bb
            bas[ctx:, :units] = bf
            meta.append(dict(kind="ST", fc_start=fc_count, n_fc=len(blk["fc"]),
                             slab_idx=len(st_basis)))
            st_basis.append(bas)

        fc_count += len(blk["fc"])

    def stack_or_dummy(lst, shape):
        if lst:
            return np.stack(lst)
        return np.zeros((1,) + shape, np.float32)

    slabs = dict(
        fc_w=jnp.asarray(np.stack(fc_w_list), dtype=jnp.bfloat16),
        fc_b=jnp.asarray(np.stack(fc_b_list), dtype=jnp.float32),
        g_proj=jnp.asarray(stack_or_dummy(g_proj, (2 * th_g, u_max)),
                           dtype=jnp.bfloat16),
        g_basis=jnp.asarray(stack_or_dummy(g_basis, (cp, 2 * th_g)),
                            dtype=jnp.bfloat16),
        g_bias=jnp.asarray(stack_or_dummy(g_bias, (cp, 1)), dtype=jnp.float32),
        st_basis=jnp.asarray(stack_or_dummy(st_basis, (cp, u_max)),
                             dtype=jnp.bfloat16),
    )
    return slabs, tuple(meta)


# ----------------------------------------------------------------------------
# Single fused kernel: all blocks + residual bookkeeping, one pallas_call.
# ----------------------------------------------------------------------------
def make_nbeats_fused_kernel(meta, ctx):
    n_blocks = len(meta)

    def kernel(x_ref, fc_w_ref, fc_b_ref, g_proj_ref, g_basis_ref, g_bias_ref,
               st_basis_ref, out_ref):
        backcast = x_ref[...]                       # [ctx, bt] f32, batch on lanes
        forecast = None

        for bi, m in enumerate(meta):
            # --- fc stack (Linear + ReLU chain), bf16 operands, f32 accumulate ---
            h = backcast
            for li in range(m["n_fc"]):
                idx = m["fc_start"] + li
                w = fc_w_ref[idx, :, : h.shape[0]]      # bf16, static Ref slice
                b = fc_b_ref[idx]                       # f32 [u_max, 1]
                h = jnp.maximum(
                    jnp.dot(w, h.astype(jnp.bfloat16),
                            preferred_element_type=jnp.float32) + b,
                    0.0)

            si = m["slab_idx"]
            if m["kind"] == "G":
                # one stacked projection (theta_b rows ++ theta_f rows) + relu
                theta = jnp.maximum(
                    jnp.dot(g_proj_ref[si], h.astype(jnp.bfloat16),
                            preferred_element_type=jnp.float32),
                    0.0)                                # [2*th_g, bt]
                # one block-diagonal basis matmul -> [ctx+pred, bt], + stacked bias
                bf = jnp.dot(g_basis_ref[si], theta.astype(jnp.bfloat16),
                             preferred_element_type=jnp.float32) + g_bias_ref[si]
            else:
                # S/T: theta projection pre-folded into basis -> single matmul
                bf = jnp.dot(st_basis_ref[si], h.astype(jnp.bfloat16),
                             preferred_element_type=jnp.float32)  # [ctx+pred, bt]

            f = bf[ctx:, :]                             # forecast rows [pred, bt]
            forecast = f if forecast is None else forecast + f

            # backcast residual only feeds later blocks (dead for the last one)
            if bi < n_blocks - 1:
                backcast = backcast - bf[:ctx, :]

        out_ref[...] = forecast                         # [pred, bt] lane-dense store

    return kernel


def nbeats_prediction_forward_pallas(slabs, past_target, *, meta,
                                     context_length, prediction_length,
                                     batch_tile=512):
    """NBEATSPredictionNetwork.forward: returns [batch, 1, prediction_length]."""
    batch = past_target.shape[0]
    ctx, pred = context_length, prediction_length

    # batch on the 128-lane axis -> lane-dense loads/stores.
    # (Host transpose kept: cheap vs per-block compute and robust at tiny shapes.)
    x_t = past_target.T                                  # [ctx, batch]

    bt = batch if batch <= batch_tile else batch_tile
    if pl.cdiv(batch, bt) == 1 and batch >= 256:
        # v7x has 2 TensorCores: guarantee >= 2 grid steps when the batch is
        # wide enough to split into full lane tiles.
        bt = ((batch + 1) // 2 + 127) // 128 * 128
    grid = (pl.cdiv(batch, bt),)
    # NOTE: a partial last tile is zero/garbage-padded by Pallas; those lanes are
    # clipped on the output store and never feed a lane reduction.

    kernel = make_nbeats_fused_kernel(meta, ctx)

    def replicated(arr):
        # full-shape block, constant index -> fetched once, resident in VMEM
        nd = arr.ndim
        return pl.BlockSpec(arr.shape, lambda i, _nd=nd: (0,) * _nd)

    # Per-chip VMEM budget: ~75% of physical capacity, capped at 100 MiB
    # (v5e/v6e: 128 MiB physical; v7x: 64 MiB -> ~48 MiB budget). Safe fallback.
    try:
        vmem_cap = pltpu.get_tpu_info().vmem_capacity_bytes
        vmem_limit = min(100 * 1024 * 1024, int(vmem_cap * 0.75))
    except Exception:
        vmem_limit = 32 * 1024 * 1024

    out_t = pl.pallas_call(
        kernel,
        out_shape=jax.ShapeDtypeStruct((pred, batch), jnp.float32),
        grid=grid,
        in_specs=[
            pl.BlockSpec((ctx, bt), lambda i: (0, i)),   # x, tiled over batch lanes
            replicated(slabs["fc_w"]), replicated(slabs["fc_b"]),
            replicated(slabs["g_proj"]), replicated(slabs["g_basis"]),
            replicated(slabs["g_bias"]), replicated(slabs["st_basis"]),
        ],
        out_specs=pl.BlockSpec((pred, bt), lambda i: (0, i)),
        compiler_params=pltpu.CompilerParams(
            dimension_semantics=("parallel",),            # both TCs on v7x
            vmem_limit_bytes=vmem_limit,
        ),
    )(x_t, slabs["fc_w"], slabs["fc_b"], slabs["g_proj"], slabs["g_basis"],
      slabs["g_bias"], slabs["st_basis"])

    return out_t.T[:, None, :]                            # [batch, 1, pred]


# ----------------------------------------------------------------------------
# Pure-JAX f32 reference (PyTorch math, [batch, time] layout) for correctness.
# ----------------------------------------------------------------------------
def _block_forward_ref(blk, x):
    h = x
    for w, b in blk["fc"]:
        h = jnp.maximum(h @ w.T + b, 0.0)
    if blk["kind"] == "G":
        theta_b = jnp.maximum(h @ blk["thb_w"].T, 0.0)
        theta_f = jnp.maximum(h @ blk["thf_w"].T, 0.0)
        return (theta_b @ blk["back_w"].T + blk["back_b"],
                theta_f @ blk["fore_w"].T + blk["fore_b"])
    theta = h @ blk["theta_w"].T
    return theta @ blk["s_back"], theta @ blk["s_fore"]


def nbeats_prediction_forward_ref(blocks, past_target):
    if len(blocks) == 1:
        _, forecast = _block_forward_ref(blocks[0], past_target)
        return forecast[:, None, :]
    b0, forecast = _block_forward_ref(blocks[0], past_target)
    backcast = past_target - b0
    for i in range(1, len(blocks) - 1):
        b, f = _block_forward_ref(blocks[i], backcast)
        backcast = backcast - b
        forecast = forecast + f
    _, last_forecast = _block_forward_ref(blocks[-1], backcast)
    return (forecast + last_forecast)[:, None, :]


# ----------------------------------------------------------------------------
if __name__ == "__main__":
    # Small config consistent with NBEATSNetwork.__init__
    prediction_length = 8
    context_length = 16
    num_stacks = 3
    widths = [32, 32, 32]
    num_blocks = [1, 1, 1]
    num_block_layers = [2, 2, 2]
    expansion_coefficient_lengths = [3, 8, 4]   # used by 'T' and 'G' stacks
    stack_types = ["T", "S", "G"]
    batch = 2

    key = jax.random.PRNGKey(0)
    key, pkey, xkey = jax.random.split(key, 3)

    blocks = build_nbeats_blocks(
        pkey, prediction_length, context_length, num_stacks, widths,
        num_blocks, num_block_layers, expansion_coefficient_lengths, stack_types,
    )
    slabs, meta = pack_nbeats_params(blocks, context_length, prediction_length)

    past_target = jax.random.normal(xkey, (batch, context_length), jnp.float32)

    fwd = jax.jit(
        functools.partial(
            nbeats_prediction_forward_pallas,
            meta=meta,
            context_length=context_length,
            prediction_length=prediction_length,
        )
    )
    out = jax.block_until_ready(fwd(slabs, past_target))

    ref = nbeats_prediction_forward_ref(blocks, past_target)
    assert out.shape == (batch, 1, prediction_length), out.shape
    # bf16 MXU operands (f32 accumulation) -> tolerance scaled by output magnitude.
    ref_np = np.asarray(ref)
    scale = max(1.0, float(np.max(np.abs(ref_np))))
    np.testing.assert_allclose(np.asarray(out), ref_np,
                               rtol=5e-2, atol=5e-2 * scale)

    print("KERNEL_OK")
</pallas_src>

<mosaic_0001>
module attributes {stable_mosaic.version = 11 : i64} {
  func.func @kernel(%arg0: i32, %arg1: memref<16x2xf32, #tpu.memory_space<vmem>>, %arg2: memref<6x32x32xbf16, #tpu.memory_space<vmem>>, %arg3: memref<6x32x1xf32, #tpu.memory_space<vmem>>, %arg4: memref<1x8x32xbf16, #tpu.memory_space<vmem>>, %arg5: memref<1x24x8xbf16, #tpu.memory_space<vmem>>, %arg6: memref<1x24x1xf32, #tpu.memory_space<vmem>>, %arg7: memref<2x24x32xbf16, #tpu.memory_space<vmem>>, %arg8: memref<8x2xf32, #tpu.memory_space<vmem>>) attributes {dimension_semantics = [#tpu.dimension_semantics<parallel>], iteration_bounds = array<i64: 1>, scalar_prefetch = 0 : i64, scratch_operands = 0 : i64, tpu.core_type = #tpu.core_type<tc>, window_params = [{transform_indices = @transform_0, window_bounds = array<i64: 16, 2>}, {pipeline_mode = #tpu.pipeline_mode<synchronous>, transform_indices = @transform_1, window_bounds = array<i64: 6, 32, 32>}, {pipeline_mode = #tpu.pipeline_mode<synchronous>, transform_indices = @transform_2, window_bounds = array<i64: 6, 32, 1>}, {pipeline_mode = #tpu.pipeline_mode<synchronous>, transform_indices = @transform_3, window_bounds = array<i64: 1, 8, 32>}, {pipeline_mode = #tpu.pipeline_mode<synchronous>, transform_indices = @transform_4, window_bounds = array<i64: 1, 24, 8>}, {pipeline_mode = #tpu.pipeline_mode<synchronous>, transform_indices = @transform_5, window_bounds = array<i64: 1, 24, 1>}, {pipeline_mode = #tpu.pipeline_mode<synchronous>, transform_indices = @transform_6, window_bounds = array<i64: 2, 24, 32>}, {transform_indices = @transform_7, window_bounds = array<i64: 8, 2>}]} {
    %c0 = arith.constant 0 : index
    %c0_0 = arith.constant 0 : index
    %0 = vector.load %arg1[%c0, %c0_0] : memref<16x2xf32, #tpu.memory_space<vmem>>, vector<16x2xf32>
    %c0_1 = arith.constant 0 : index
    %c0_2 = arith.constant 0 : index
    %c0_3 = arith.constant 0 : index
    %1 = vector.load %arg2[%c0_1, %c0_2, %c0_3] : memref<6x32x32xbf16, #tpu.memory_space<vmem>>, vector<1x32x16xbf16>
    %2 = vector.shape_cast %1 : vector<1x32x16xbf16> to vector<32x16xbf16>
    %c0_4 = arith.constant 0 : index
    %c0_5 = arith.constant 0 : index
    %c0_6 = arith.constant 0 : index
    %3 = vector.load %arg3[%c0_4, %c0_5, %c0_6] : memref<6x32x1xf32, #tpu.memory_space<vmem>>, vector<1x32x1xf32>
    %4 = vector.shape_cast %3 : vector<1x32x1xf32> to vector<32x1xf32>
    %5 = arith.truncf %0 : vector<16x2xf32> to vector<16x2xbf16>
    %cst = arith.constant dense<0.000000e+00> : vector<32x2xf32>
    %6 = tpu.matmul %2, %5, %cst {dimension_numbers = #tpu.dot_dimension_numbers<[1], [0], [0], [1], [0, 0, 1, 1], [], []>} : vector<32x16xbf16>, vector<16x2xbf16>, vector<32x2xf32> -> vector<32x2xf32>
    %7 = vector.broadcast %4 : vector<32x1xf32> to vector<32x2xf32>
    %8 = arith.addf %6, %7 : vector<32x2xf32>
    %cst_7 = arith.constant 0.000000e+00 : f32
    %9 = vector.broadcast %cst_7 : f32 to vector<32x2xf32>
    %10 = arith.maximumf %8, %9 : vector<32x2xf32>
    %c1 = arith.constant 1 : index
    %c0_8 = arith.constant 0 : index
    %c0_9 = arith.constant 0 : index
    %11 = vector.load %arg2[%c1, %c0_8, %c0_9] : memref<6x32x32xbf16, #tpu.memory_space<vmem>>, vector<1x32x32xbf16>
    %12 = vector.shape_cast %11 : vector<1x32x32xbf16> to vector<32x32xbf16>
    %c1_10 = arith.constant 1 : index
    %c0_11 = arith.constant 0 : index
    %c0_12 = arith.constant 0 : index
    %13 = vector.load %arg3[%c1_10, %c0_11, %c0_12] : memref<6x32x1xf32, #tpu.memory_space<vmem>>, vector<1x32x1xf32>
    %14 = vector.shape_cast %13 : vector<1x32x1xf32> to vector<32x1xf32>
    %15 = arith.truncf %10 : vector<32x2xf32> to vector<32x2xbf16>
    %cst_13 = arith.constant dense<0.000000e+00> : vector<32x2xf32>
    %16 = tpu.matmul %12, %15, %cst_13 {dimension_numbers = #tpu.dot_dimension_numbers<[1], [0], [0], [1], [0, 0, 1, 1], [], []>} : vector<32x32xbf16>, vector<32x2xbf16>, vector<32x2xf32> -> vector<32x2xf32>
    %17 = vector.broadcast %14 : vector<32x1xf32> to vector<32x2xf32>
    %18 = arith.addf %16, %17 : vector<32x2xf32>
    %cst_14 = arith.constant 0.000000e+00 : f32
    %19 = vector.broadcast %cst_14 : f32 to vector<32x2xf32>
    %20 = arith.maximumf %18, %19 : vector<32x2xf32>
    %c0_15 = arith.constant 0 : index
    %c0_16 = arith.constant 0 : index
    %c0_17 = arith.constant 0 : index
    %21 = vector.load %arg7[%c0_15, %c0_16, %c0_17] : memref<2x24x32xbf16, #tpu.memory_space<vmem>>, vector<1x24x32xbf16>
    %22 = vector.shape_cast %21 : vector<1x24x32xbf16> to vector<24x32xbf16>
    %23 = arith.truncf %20 : vector<32x2xf32> to vector<32x2xbf16>
    %cst_18 = arith.constant dense<0.000000e+00> : vector<24x2xf32>
    %24 = tpu.matmul %22, %23, %cst_18 {dimension_numbers = #tpu.dot_dimension_numbers<[1], [0], [0], [1], [0, 0, 1, 1], [], []>} : vector<24x32xbf16>, vector<32x2xbf16>, vector<24x2xf32> -> vector<24x2xf32>
    %25 = vector.extract_strided_slice %24 {offsets = [16, 0], sizes = [8, 2], strides = [1, 1]} : vector<24x2xf32> to vector<8x2xf32>
    %26 = vector.extract_strided_slice %24 {offsets = [0, 0], sizes = [16, 2], strides = [1, 1]} : vector<24x2xf32> to vector<16x2xf32>
    %27 = arith.subf %0, %26 : vector<16x2xf32>
    %c2 = arith.constant 2 : index
    %c0_19 = arith.constant 0 : index
    %c0_20 = arith.constant 0 : index
    %28 = vector.load %arg2[%c2, %c0_19, %c0_20] : memref<6x32x32xbf16, #tpu.memory_space<vmem>>, vector<1x32x16xbf16>
    %29 = vector.shape_cast %28 : vector<1x32x16xbf16> to vector<32x16xbf16>
    %c2_21 = arith.constant 2 : index
    %c0_22 = arith.constant 0 : index
    %c0_23 = arith.constant 0 : index
    %30 = vector.load %arg3[%c2_21, %c0_22, %c0_23] : memref<6x32x1xf32, #tpu.memory_space<vmem>>, vector<1x32x1xf32>
    %31 = vector.shape_cast %30 : vector<1x32x1xf32> to vector<32x1xf32>
    %32 = arith.truncf %27 : vector<16x2xf32> to vector<16x2xbf16>
    %cst_24 = arith.constant dense<0.000000e+00> : vector<32x2xf32>
    %33 = tpu.matmul %29, %32, %cst_24 {dimension_numbers = #tpu.dot_dimension_numbers<[1], [0], [0], [1], [0, 0, 1, 1], [], []>} : vector<32x16xbf16>, vector<16x2xbf16>, vector<32x2xf32> -> vector<32x2xf32>
    %34 = vector.broadcast %31 : vector<32x1xf32> to vector<32x2xf32>
    %35 = arith.addf %33, %34 : vector<32x2xf32>
    %cst_25 = arith.constant 0.000000e+00 : f32
    %36 = vector.broadcast %cst_25 : f32 to vector<32x2xf32>
    %37 = arith.maximumf %35, %36 : vector<32x2xf32>
    %c3 = arith.constant 3 : index
    %c0_26 = arith.constant 0 : index
    %c0_27 = arith.constant 0 : index
    %38 = vector.load %arg2[%c3, %c0_26, %c0_27] : memref<6x32x32xbf16, #tpu.memory_space<vmem>>, vector<1x32x32xbf16>
    %39 = vector.shape_cast %38 : vector<1x32x32xbf16> to vector<32x32xbf16>
    %c3_28 = arith.constant 3 : index
    %c0_29 = arith.constant 0 : index
    %c0_30 = arith.constant 0 : index
    %40 = vector.load %arg3[%c3_28, %c0_29, %c0_30] : memref<6x32x1xf32, #tpu.memory_space<vmem>>, vector<1x32x1xf32>
    %41 = vector.shape_cast %40 : vector<1x32x1xf32> to vector<32x1xf32>
    %42 = arith.truncf %37 : vector<32x2xf32> to vector<32x2xbf16>
    %cst_31 = arith.constant dense<0.000000e+00> : vector<32x2xf32>
    %43 = tpu.matmul %39, %42, %cst_31 {dimension_numbers = #tpu.dot_dimension_numbers<[1], [0], [0], [1], [0, 0, 1, 1], [], []>} : vector<32x32xbf16>, vector<32x2xbf16>, vector<32x2xf32> -> vector<32x2xf32>
    %44 = vector.broadcast %41 : vector<32x1xf32> to vector<32x2xf32>
    %45 = arith.addf %43, %44 : vector<32x2xf32>
    %cst_32 = arith.constant 0.000000e+00 : f32
    %46 = vector.broadcast %cst_32 : f32 to vector<32x2xf32>
    %47 = arith.maximumf %45, %46 : vector<32x2xf32>
    %c1_33 = arith.constant 1 : index
    %c0_34 = arith.constant 0 : index
    %c0_35 = arith.constant 0 : index
    %48 = vector.load %arg7[%c1_33, %c0_34, %c0_35] : memref<2x24x32xbf16, #tpu.memory_space<vmem>>, vector<1x24x32xbf16>
    %49 = vector.shape_cast %48 : vector<1x24x32xbf16> to vector<24x32xbf16>
    %50 = arith.truncf %47 : vector<32x2xf32> to vector<32x2xbf16>
    %cst_36 = arith.constant dense<0.000000e+00> : vector<24x2xf32>
    %51 = tpu.matmul %49, %50, %cst_36 {dimension_numbers = #tpu.dot_dimension_numbers<[1], [0], [0], [1], [0, 0, 1, 1], [], []>} : vector<24x32xbf16>, vector<32x2xbf16>, vector<24x2xf32> -> vector<24x2xf32>
    %52 = vector.extract_strided_slice %51 {offsets = [16, 0], sizes = [8, 2], strides = [1, 1]} : vector<24x2xf32> to vector<8x2xf32>
    %53 = arith.addf %25, %52 : vector<8x2xf32>
    %54 = vector.extract_strided_slice %51 {offsets = [0, 0], sizes = [16, 2], strides = [1, 1]} : vector<24x2xf32> to vector<16x2xf32>
    %55 = arith.subf %27, %54 : vector<16x2xf32>
    %c4 = arith.constant 4 : index
    %c0_37 = arith.constant 0 : index
    %c0_38 = arith.constant 0 : index
    %56 = vector.load %arg2[%c4, %c0_37, %c0_38] : memref<6x32x32xbf16, #tpu.memory_space<vmem>>, vector<1x32x16xbf16>
    %57 = vector.shape_cast %56 : vector<1x32x16xbf16> to vector<32x16xbf16>
    %c4_39 = arith.constant 4 : index
    %c0_40 = arith.constant 0 : index
    %c0_41 = arith.constant 0 : index
    %58 = vector.load %arg3[%c4_39, %c0_40, %c0_41] : memref<6x32x1xf32, #tpu.memory_space<vmem>>, vector<1x32x1xf32>
    %59 = vector.shape_cast %58 : vector<1x32x1xf32> to vector<32x1xf32>
    %60 = arith.truncf %55 : vector<16x2xf32> to vector<16x2xbf16>
    %cst_42 = arith.constant dense<0.000000e+00> : vector<32x2xf32>
    %61 = tpu.matmul %57, %60, %cst_42 {dimension_numbers = #tpu.dot_dimension_numbers<[1], [0], [0], [1], [0, 0, 1, 1], [], []>} : vector<32x16xbf16>, vector<16x2xbf16>, vector<32x2xf32> -> vector<32x2xf32>
    %62 = vector.broadcast %59 : vector<32x1xf32> to vector<32x2xf32>
    %63 = arith.addf %61, %62 : vector<32x2xf32>
    %cst_43 = arith.constant 0.000000e+00 : f32
    %64 = vector.broadcast %cst_43 : f32 to vector<32x2xf32>
    %65 = arith.maximumf %63, %64 : vector<32x2xf32>
    %c5 = arith.constant 5 : index
    %c0_44 = arith.constant 0 : index
    %c0_45 = arith.constant 0 : index
    %66 = vector.load %arg2[%c5, %c0_44, %c0_45] : memref<6x32x32xbf16, #tpu.memory_space<vmem>>, vector<1x32x32xbf16>
    %67 = vector.shape_cast %66 : vector<1x32x32xbf16> to vector<32x32xbf16>
    %c5_46 = arith.constant 5 : index
    %c0_47 = arith.constant 0 : index
    %c0_48 = arith.constant 0 : index
    %68 = vector.load %arg3[%c5_46, %c0_47, %c0_48] : memref<6x32x1xf32, #tpu.memory_space<vmem>>, vector<1x32x1xf32>
    %69 = vector.shape_cast %68 : vector<1x32x1xf32> to vector<32x1xf32>
    %70 = arith.truncf %65 : vector<32x2xf32> to vector<32x2xbf16>
    %cst_49 = arith.constant dense<0.000000e+00> : vector<32x2xf32>
    %71 = tpu.matmul %67, %70, %cst_49 {dimension_numbers = #tpu.dot_dimension_numbers<[1], [0], [0], [1], [0, 0, 1, 1], [], []>} : vector<32x32xbf16>, vector<32x2xbf16>, vector<32x2xf32> -> vector<32x2xf32>
    %72 = vector.broadcast %69 : vector<32x1xf32> to vector<32x2xf32>
    %73 = arith.addf %71, %72 : vector<32x2xf32>
    %cst_50 = arith.constant 0.000000e+00 : f32
    %74 = vector.broadcast %cst_50 : f32 to vector<32x2xf32>
    %75 = arith.maximumf %73, %74 : vector<32x2xf32>
    %c0_51 = arith.constant 0 : index
    %c0_52 = arith.constant 0 : index
    %c0_53 = arith.constant 0 : index
    %76 = vector.load %arg4[%c0_51, %c0_52, %c0_53] : memref<1x8x32xbf16, #tpu.memory_space<vmem>>, vector<1x8x32xbf16>
    %77 = vector.shape_cast %76 : vector<1x8x32xbf16> to vector<8x32xbf16>
    %78 = arith.truncf %75 : vector<32x2xf32> to vector<32x2xbf16>
    %cst_54 = arith.constant dense<0.000000e+00> : vector<8x2xf32>
    %79 = tpu.matmul %77, %78, %cst_54 {dimension_numbers = #tpu.dot_dimension_numbers<[1], [0], [0], [1], [0, 0, 1, 1], [], []>} : vector<8x32xbf16>, vector<32x2xbf16>, vector<8x2xf32> -> vector<8x2xf32>
    %cst_55 = arith.constant 0.000000e+00 : f32
    %80 = vector.broadcast %cst_55 : f32 to vector<8x2xf32>
    %81 = arith.maximumf %79, %80 : vector<8x2xf32>
    %c0_56 = arith.constant 0 : index
    %c0_57 = arith.constant 0 : index
    %c0_58 = arith.constant 0 : index
    %82 = vector.load %arg5[%c0_56, %c0_57, %c0_58] : memref<1x24x8xbf16, #tpu.memory_space<vmem>>, vector<1x24x8xbf16>
    %83 = vector.shape_cast %82 : vector<1x24x8xbf16> to vector<24x8xbf16>
    %84 = arith.truncf %81 : vector<8x2xf32> to vector<8x2xbf16>
    %cst_59 = arith.constant dense<0.000000e+00> : vector<24x2xf32>
    %85 = tpu.matmul %83, %84, %cst_59 {dimension_numbers = #tpu.dot_dimension_numbers<[1], [0], [0], [1], [0, 0, 1, 1], [], []>} : vector<24x8xbf16>, vector<8x2xbf16>, vector<24x2xf32> -> vector<24x2xf32>
    %c0_60 = arith.constant 0 : index
    %c0_61 = arith.constant 0 : index
    %c0_62 = arith.constant 0 : index
    %86 = vector.load %arg6[%c0_60, %c0_61, %c0_62] : memref<1x24x1xf32, #tpu.memory_space<vmem>>, vector<1x24x1xf32>
    %87 = vector.shape_cast %86 : vector<1x24x1xf32> to vector<24x1xf32>
    %88 = vector.broadcast %87 : vector<24x1xf32> to vector<24x2xf32>
    %89 = arith.addf %85, %88 : vector<24x2xf32>
    %90 = vector.extract_strided_slice %89 {offsets = [16, 0], sizes = [8, 2], strides = [1, 1]} : vector<24x2xf32> to vector<8x2xf32>
    %91 = arith.addf %53, %90 : vector<8x2xf32>
    %c0_63 = arith.constant 0 : index
    %c0_64 = arith.constant 0 : index
    %92 = vector.load %arg8[%c0_63, %c0_64] : memref<8x2xf32, #tpu.memory_space<vmem>>, vector<8x2xf32>
    tpu.vector_store %arg8[%c0_63, %c0_64], %91 {strides = array<i32>} : memref<8x2xf32, #tpu.memory_space<vmem>>, vector<8x2xf32>,
    return
  }
  func.func @transform_0(%arg0: i32) -> (i32, i32) {
    %c0_i32 = arith.constant 0 : i32
    %c0_i32_0 = arith.constant 0 : i32
    return %c0_i32, %arg0 : i32, i32
  }
  func.func @transform_1(%arg0: i32) -> (i32, i32, i32) {
    %c0_i32 = arith.constant 0 : i32
    %c0_i32_0 = arith.constant 0 : i32
    %c0_i32_1 = arith.constant 0 : i32
    %c0_i32_2 = arith.constant 0 : i32
    return %c0_i32, %c0_i32_0, %c0_i32_1 : i32, i32, i32
  }
  func.func @transform_2(%arg0: i32) -> (i32, i32, i32) {
    %c0_i32 = arith.constant 0 : i32
    %c0_i32_0 = arith.constant 0 : i32
    %c0_i32_1 = arith.constant 0 : i32
    %c0_i32_2 = arith.constant 0 : i32
    return %c0_i32, %c0_i32_0, %c0_i32_1 : i32, i32, i32
  }
  func.func @transform_3(%arg0: i32) -> (i32, i32, i32) {
    %c0_i32 = arith.constant 0 : i32
    %c0_i32_0 = arith.constant 0 : i32
    %c0_i32_1 = arith.constant 0 : i32
    %c0_i32_2 = arith.constant 0 : i32
    return %c0_i32, %c0_i32_0, %c0_i32_1 : i32, i32, i32
  }
  func.func @transform_4(%arg0: i32) -> (i32, i32, i32) {
    %c0_i32 = arith.constant 0 : i32
    %c0_i32_0 = arith.constant 0 : i32
    %c0_i32_1 = arith.constant 0 : i32
    %c0_i32_2 = arith.constant 0 : i32
    return %c0_i32, %c0_i32_0, %c0_i32_1 : i32, i32, i32
  }
  func.func @transform_5(%arg0: i32) -> (i32, i32, i32) {
    %c0_i32 = arith.constant 0 : i32
    %c0_i32_0 = arith.constant 0 : i32
    %c0_i32_1 = arith.constant 0 : i32
    %c0_i32_2 = arith.constant 0 : i32
    return %c0_i32, %c0_i32_0, %c0_i32_1 : i32, i32, i32
  }
  func.func @transform_6(%arg0: i32) -> (i32, i32, i32) {
    %c0_i32 = arith.constant 0 : i32
    %c0_i32_0 = arith.constant 0 : i32
    %c0_i32_1 = arith.constant 0 : i32
    %c0_i32_2 = arith.constant 0 : i32
    return %c0_i32, %c0_i32_0, %c0_i32_1 : i32, i32, i32
  }
  func.func @transform_7(%arg0: i32) -> (i32, i32) {
    %c0_i32 = arith.constant 0 : i32
    %c0_i32_0 = arith.constant 0 : i32
    return %c0_i32, %arg0 : i32, i32
  }
}

</mosaic_0001>

<llo_original>
// kernel: nbeats_prediction_forward_pallas.1
$region0: #{nbeats_prediction_forward_pallas.1}
  #allocation0 [shape = 'u32[]', space=smem, size = 0x4, offset = 0x4, fixed_abs, tag = 'smem constant byte address 0x4 - core index']
  #allocation1 [shape = 'u32[72,128]{1,0:T(1,128)}', space=vmem, size = 0x9000, scoped, tag = 'internal scratch']
  %s0 = inlined_call_operand.vmem [shape: f32[16,2], index: 0, kind: input, shape index: {}]
  %s1 = inlined_call_operand.vmem [shape: bf16[6,32,32], index: 1, kind: input, shape index: {}]
  %s2 = inlined_call_operand.vmem [shape: f32[6,32,1], index: 2, kind: input, shape index: {}]
  %s3 = inlined_call_operand.vmem [shape: bf16[1,8,32], index: 3, kind: input, shape index: {}]
  %s4 = inlined_call_operand.vmem [shape: bf16[1,24,8], index: 4, kind: input, shape index: {}]
  %s5 = inlined_call_operand.vmem [shape: f32[1,24,1], index: 5, kind: input, shape index: {}]
  %s6 = inlined_call_operand.vmem [shape: bf16[2,24,32], index: 6, kind: input, shape index: {}]
  %s7 = inlined_call_operand.vmem [shape: f32[8,2], index: 7, kind: output, shape index: {}]
  %s8 = sld [smem:[#allocation0]]
  $region38: #{nbeats_prediction_forward_pallas.1} parent=0
    _
  %s10 = ssub.s32 1, %s8
  %s11 = scalar_select 0, %s10, %s8
  // Predicated region
  $region2: #{nbeats_prediction_forward_pallas.1} parent=0 // pred_check
    _
  $region3: #{nbeats_prediction_forward_pallas.1} parent=0 // pred_check_branch
    %13 = sbr.rel (0) target = $region5
  $region4: #{nbeats_prediction_forward_pallas.1} parent=0 // pred_region
    _
  $region5: #{nbeats_prediction_forward_pallas.1} parent=0 // pred_fallthru
    _
  // Predicated region
  $region6: #{nbeats_prediction_forward_pallas.1} parent=0 // pred_check
    _
  $region7: #{nbeats_prediction_forward_pallas.1} parent=0 // pred_check_branch
    %15 = sbr.rel (0) target = $region9
  $region8: #{nbeats_prediction_forward_pallas.1} parent=0 // pred_region
    _
  $region9: #{nbeats_prediction_forward_pallas.1} parent=0 // pred_fallthru
    _
  // Predicated region
  $region10: #{nbeats_prediction_forward_pallas.1} parent=0 // pred_check
    _
  $region11: #{nbeats_prediction_forward_pallas.1} parent=0 // pred_check_branch
    %17 = sbr.rel (0) target = $region13
  $region12: #{nbeats_prediction_forward_pallas.1} parent=0 // pred_region
    _
  $region13: #{nbeats_prediction_forward_pallas.1} parent=0 // pred_fallthru
    _
  // Predicated region
  $region14: #{nbeats_prediction_forward_pallas.1} parent=0 // pred_check
    _
  $region15: #{nbeats_prediction_forward_pallas.1} parent=0 // pred_check_branch
    %19 = sbr.rel (0) target = $region17
  $region16: #{nbeats_prediction_forward_pallas.1} parent=0 // pred_region
    _
  $region17: #{nbeats_prediction_forward_pallas.1} parent=0 // pred_fallthru
    _
  // Predicated region
  $region18: #{nbeats_prediction_forward_pallas.1} parent=0 // pred_check
    _
  $region19: #{nbeats_prediction_forward_pallas.1} parent=0 // pred_check_branch
    %21 = sbr.rel (0) target = $region21
  $region20: #{nbeats_prediction_forward_pallas.1} parent=0 // pred_region
    _
  $region21: #{nbeats_prediction_forward_pallas.1} parent=0 // pred_fallthru
    _
  // Predicated region
  $region22: #{nbeats_prediction_forward_pallas.1} parent=0 // pred_check
    _
  $region23: #{nbeats_prediction_forward_pallas.1} parent=0 // pred_check_branch
    %23 = sbr.rel (0) target = $region25
  $region24: #{nbeats_prediction_forward_pallas.1} parent=0 // pred_region
    _
  $region25: #{nbeats_prediction_forward_pallas.1} parent=0 // pred_fallthru
    _
  // Predicated region
  $region26: #{nbeats_prediction_forward_pallas.1} parent=0 // pred_check
    _
  $region27: #{nbeats_prediction_forward_pallas.1} parent=0 // pred_check_branch
    %25 = sbr.rel (0) target = $region29
  $region28: #{nbeats_prediction_forward_pallas.1} parent=0 // pred_region
    _
  $region29: #{nbeats_prediction_forward_pallas.1} parent=0 // pred_fallthru
    _
  %v27 = vld [vmem:[%s0] sm:$0xff]
  %v28 = vld [vmem:[%s0 + $0x8] sm:$0xff]
  %v29 = vld [vmem:[%s1] sm:$0xf]
  %v30 = vld [vmem:[%s1 + $0x4] sm:$0xf]
  %v31 = vld [vmem:[%s1 + $0x8] sm:$0xf]
  %v32 = vld [vmem:[%s1 + $0xc] sm:$0xf]
  %v33 = vld [vmem:[%s2] sm:$0xff]
  %v34 = vld [vmem:[%s2 + $0x8] sm:$0xff]
  %v35 = vld [vmem:[%s2 + $0x10] sm:$0xff]
  %v36 = vld [vmem:[%s2 + $0x18] sm:$0xff]
  %v37 = vpack.c.bf16 %v28, %v27
  %39 = vset.pattern.permute.xlu0 0
  %40 = vperm.xlu0 %39, %v33
  %v41 = vpop.permute.xlu0 %40
  %44 = vset.pattern.permute.xlu0 0
  %45 = vperm.xlu0 %44, %v34
  %v46 = vpop.permute.xlu0 %45
  %49 = vset.pattern.permute.xlu0 0
  %50 = vperm.xlu0 %49, %v35
  %v51 = vpop.permute.xlu0 %50
  %54 = vset.pattern.permute.xlu0 0
  %55 = vperm.xlu0 %54, %v36
  %v56 = vpop.permute.xlu0 %55
  %v62 = vunpack.c.l.b16 %v29
  %v63 = vunpack.c.l.b16 %v30
  %v64 = vunpack.c.l.b16 %v31
  %v65 = vunpack.c.l.b16 %v32
  %v66 = vpack.c.b16 %v63, %v62
  %v67 = vpack.c.b16 %v65, %v64
  %vm68 = vcmask 130048
  %v70 = vsel %vm68, %v66, 0
  %v73 = vsel %vm68, %v67, 0
  %75 = vmatpush.bf16.msra.mxu0 0
  %76 = vmatpush.bf16.msra.mxu0 0
  %77 = vmatpush.bf16.msra.mxu0 0
  %78 = vmatpush.bf16.msra.mxu0 0
  %79 = vmatpush.bf16.msra.mxu0 0
  %80 = vmatpush.bf16.msra.mxu0 0
  %81 = vmatpush.bf16.msra.mxu0 0
  %82 = vmatpush.bf16.msra.mxu0 %v37
  %83 = vmatmul.bf16.gmra.mxu0 %v70
  %v84 = vpop.f32.mrf.mxu0
  %v85 = vadd.f32 %v41, %v84
  %v86 = vpop.f32.mrf.mxu0
  %v87 = vadd.f32 %v46, %v86
  %88 = vmatmul.bf16.gmra.mxu0 %v73
  %v89 = vpop.f32.mrf.mxu0
  %v90 = vadd.f32 %v51, %v89
  %v91 = vpop.f32.mrf.mxu0
  %v92 = vadd.f32 %v56, %v91
  %93 = vdwg.mxu0
  %v94 = vmax.f32 %v85, 0.0
  %v95 = vmax.f32 %v87, 0.0
  %v96 = vmax.f32 %v90, 0.0
  %v97 = vmax.f32 %v92, 0.0
  %s98 = scalar_lea.vmem %s1, 16
  %v99 = vld [vmem:[%s98] sm:$0xf]
  %v100 = vld [vmem:[%s98 + $0x4] sm:$0xf]
  %v101 = vld [vmem:[%s98 + $0x8] sm:$0xf]
  %v102 = vld [vmem:[%s98 + $0xc] sm:$0xf]
  %s103 = scalar_lea.vmem %s2, 32
  %v104 = vld [vmem:[%s103] sm:$0xff]
  %v105 = vld [vmem:[%s103 + $0x8] sm:$0xff]
  %v106 = vld [vmem:[%s103 + $0x10] sm:$0xff]
  %v107 = vld [vmem:[%s103 + $0x18] sm:$0xff]
  %v108 = vpack.c.bf16 %v95, %v94
  %v109 = vpack.c.bf16 %v97, %v96
  %111 = vset.pattern.permute.xlu0 0
  %112 = vperm.xlu0 %111, %v104
  %v113 = vpop.permute.xlu0 %112
  %116 = vset.pattern.permute.xlu0 0
  %117 = vperm.xlu0 %116, %v105
  %v118 = vpop.permute.xlu0 %117
  %121 = vset.pattern.permute.xlu0 0
  %122 = vperm.xlu0 %121, %v106
  %v123 = vpop.permute.xlu0 %122
  %126 = vset.pattern.permute.xlu0 0
  %127 = vperm.xlu0 %126, %v107
  %v128 = vpop.permute.xlu0 %127
  %v134 = vunpack.c.l.b16 %v99
  %v135 = vunpack.c.l.b16 %v100
  %v136 = vunpack.c.l.b16 %v101
  %v137 = vunpack.c.l.b16 %v102
  %v138 = vpack.c.b16 %v135, %v134
  %v139 = vpack.c.b16 %v137, %v136
  %vm140 = vcmask 261120
  %v142 = vsel %vm140, %v138, 0
  %v145 = vsel %vm140, %v139, 0
  %147 = vmatpush.bf16.msra.mxu0 0
  %148 = vmatpush.bf16.msra.mxu0 0
  %149 = vmatpush.bf16.msra.mxu0 0
  %150 = vmatpush.bf16.msra.mxu0 0
  %151 = vmatpush.bf16.msra.mxu0 0
  %152 = vmatpush.bf16.msra.mxu0 0
  %153 = vmatpush.bf16.msra.mxu0 %v109
  %154 = vmatpush.bf16.msra.mxu0 %v108
  %155 = vmatmul.bf16.gmra.mxu0 %v142
  %v156 = vpop.f32.mrf.mxu0
  %v157 = vadd.f32 %v113, %v156
  %v158 = vpop.f32.mrf.mxu0
  %v159 = vadd.f32 %v118, %v158
  %160 = vmatmul.bf16.gmra.mxu0 %v145
  %v161 = vpop.f32.mrf.mxu0
  %v162 = vadd.f32 %v123, %v161
  %v163 = vpop.f32.mrf.mxu0
  %v164 = vadd.f32 %v128, %v163
  %165 = vdwg.mxu0
  %v166 = vmax.f32 %v157, 0.0
  %v167 = vmax.f32 %v159, 0.0
  %v168 = vmax.f32 %v162, 0.0
  %v169 = vmax.f32 %v164, 0.0
  %v170 = vld [vmem:[%s6] sm:$0xf]
  %v171 = vld [vmem:[%s6 + $0x4] sm:$0xf]
  %v172 = vld [vmem:[%s6 + $0x8] sm:$0xf]
  %v173 = vpack.c.bf16 %v167, %v166
  %v174 = vpack.c.bf16 %v169, %v168
  %v178 = vunpack.c.l.b16 %v170
  %v179 = vunpack.c.l.b16 %v171
  %v180 = vunpack.c.l.b16 %v172
  %v181 = vpack.c.b16 %v179, %v178
  %v182 = vpack.c.b16 %v180, %v180
  %v184 = vsel %vm140, %v181, 0
  %v187 = vsel %vm140, %v182, 0
  %189 = vmatpush.bf16.msra.mxu0 0
  %190 = vmatpush.bf16.msra.mxu0 0
  %191 = vmatpush.bf16.msra.mxu0 0
  %192 = vmatpush.bf16.msra.mxu0 0
  %193 = vmatpush.bf16.msra.mxu0 0
  %194 = vmatpush.bf16.msra.mxu0 0
  %195 = vmatpush.bf16.msra.mxu0 %v174
  %196 = vmatpush.bf16.msra.mxu0 %v173
  %197 = vmatmul.bf16.gmra.mxu0 %v184
  %v198 = vpop.f32.mrf.mxu0
  %v199 = vadd.f32 0.0, %v198
  %v200 = vpop.f32.mrf.mxu0
  %v201 = vadd.f32 0.0, %v200
  %202 = vmatmul.bf16.gmra.mxu0 %v187
  %v203 = vpop.f32.mrf.mxu0
  %v204 = vadd.f32 0.0, %v203
  %v205 = vpop.f32.mrf.mxu0
  %206 = vdwg.mxu0
  %v207 = vsub.f32 %v27, %v199
  %v208 = vsub.f32 %v28, %v201
  %s209 = scalar_lea.vmem %s1, 32
  %v210 = vld [vmem:[%s209] sm:$0xf]
  %v211 = vld [vmem:[%s209 + $0x4] sm:$0xf]
  %v212 = vld [vmem:[%s209 + $0x8] sm:$0xf]
  %v213 = vld [vmem:[%s209 + $0xc] sm:$0xf]
  %s214 = scalar_lea.vmem %s2, 64
  %v215 = vld [vmem:[%s214] sm:$0xff]
  %v216 = vld [vmem:[%s214 + $0x8] sm:$0xff]
  %v217 = vld [vmem:[%s214 + $0x10] sm:$0xff]
  %v218 = vld [vmem:[%s214 + $0x18] sm:$0xff]
  %v219 = vpack.c.bf16 %v208, %v207
  %221 = vset.pattern.permute.xlu0 0
  %222 = vperm.xlu0 %221, %v215
  %v223 = vpop.permute.xlu0 %222
  %226 = vset.pattern.permute.xlu0 0
  %227 = vperm.xlu0 %226, %v216
  %v228 = vpop.permute.xlu0 %227
  %231 = vset.pattern.permute.xlu0 0
  %232 = vperm.xlu0 %231, %v217
  %v233 = vpop.permute.xlu0 %232
  %236 = vset.pattern.permute.xlu0 0
  %237 = vperm.xlu0 %236, %v218
  %v238 = vpop.permute.xlu0 %237
  %v244 = vunpack.c.l.b16 %v210
  %v245 = vunpack.c.l.b16 %v211
  %v246 = vunpack.c.l.b16 %v212
  %v247 = vunpack.c.l.b16 %v213
  %v248 = vpack.c.b16 %v245, %v244
  %v249 = vpack.c.b16 %v247, %v246
  %v251 = vsel %vm68, %v248, 0
  %v254 = vsel %vm68, %v249, 0
  %256 = vmatpush.bf16.msra.mxu0 0
  %257 = vmatpush.bf16.msra.mxu0 0
  %258 = vmatpush.bf16.msra.mxu0 0
  %259 = vmatpush.bf16.msra.mxu0 0
  %260 = vmatpush.bf16.msra.mxu0 0
  %261 = vmatpush.bf16.msra.mxu0 0
  %262 = vmatpush.bf16.msra.mxu0 0
  %263 = vmatpush.bf16.msra.mxu0 %v219
  %264 = vmatmul.bf16.gmra.mxu0 %v251
  %v265 = vpop.f32.mrf.mxu0
  %v266 = vadd.f32 %v223, %v265
  %v267 = vpop.f32.mrf.mxu0
  %v268 = vadd.f32 %v228, %v267
  %269 = vmatmul.bf16.gmra.mxu0 %v254
  %v270 = vpop.f32.mrf.mxu0
  %v271 = vadd.f32 %v233, %v270
  %v272 = vpop.f32.mrf.mxu0
  %v273 = vadd.f32 %v238, %v272
  %274 = vdwg.mxu0
  %v275 = vmax.f32 %v266, 0.0
  %v276 = vmax.f32 %v268, 0.0
  %v277 = vmax.f32 %v271, 0.0
  %v278 = vmax.f32 %v273, 0.0
  %s279 = scalar_lea.vmem %s1, 48
  %v280 = vld [vmem:[%s279] sm:$0xf]
  %v281 = vld [vmem:[%s279 + $0x4] sm:$0xf]
  %v282 = vld [vmem:[%s279 + $0x8] sm:$0xf]
  %v283 = vld [vmem:[%s279 + $0xc] sm:$0xf]
  %s284 = scalar_lea.vmem %s2, 96
  %v285 = vld [vmem:[%s284] sm:$0xff]
  %v286 = vld [vmem:[%s284 + $0x8] sm:$0xff]
  %v287 = vld [vmem:[%s284 + $0x10] sm:$0xff]
  %v288 = vld [vmem:[%s284 + $0x18] sm:$0xff]
  %v289 = vpack.c.bf16 %v276, %v275
  %v290 = vpack.c.bf16 %v278, %v277
  %292 = vset.pattern.permute.xlu0 0
  %293 = vperm.xlu0 %292, %v285
  %v294 = vpop.permute.xlu0 %293
  %297 = vset.pattern.permute.xlu0 0
  %298 = vperm.xlu0 %297, %v286
  %v299 = vpop.permute.xlu0 %298
  %302 = vset.pattern.permute.xlu0 0
  %303 = vperm.xlu0 %302, %v287
  %v304 = vpop.permute.xlu0 %303
  %307 = vset.pattern.permute.xlu0 0
  %308 = vperm.xlu0 %307, %v288
  %v309 = vpop.permute.xlu0 %308
  %v315 = vunpack.c.l.b16 %v280
  %v316 = vunpack.c.l.b16 %v281
  %v317 = vunpack.c.l.b16 %v282
  %v318 = vunpack.c.l.b16 %v283
  %v319 = vpack.c.b16 %v316, %v315
  %v320 = vpack.c.b16 %v318, %v317
  %v322 = vsel %vm140, %v319, 0
  %v325 = vsel %vm140, %v320, 0
  %327 = vmatpush.bf16.msra.mxu0 0
  %328 = vmatpush.bf16.msra.mxu0 0
  %329 = vmatpush.bf16.msra.mxu0 0
  %330 = vmatpush.bf16.msra.mxu0 0
  %331 = vmatpush.bf16.msra.mxu0 0
  %332 = vmatpush.bf16.msra.mxu0 0
  %333 = vmatpush.bf16.msra.mxu0 %v290
  %334 = vmatpush.bf16.msra.mxu0 %v289
  %335 = vmatmul.bf16.gmra.mxu0 %v322
  %v336 = vpop.f32.mrf.mxu0
  %v337 = vadd.f32 %v294, %v336
  %v338 = vpop.f32.mrf.mxu0
  %v339 = vadd.f32 %v299, %v338
  %340 = vmatmul.bf16.gmra.mxu0 %v325
  %v341 = vpop.f32.mrf.mxu0
  %v342 = vadd.f32 %v304, %v341
  %v343 = vpop.f32.mrf.mxu0
  %v344 = vadd.f32 %v309, %v343
  %345 = vdwg.mxu0
  %v346 = vmax.f32 %v337, 0.0
  %v347 = vmax.f32 %v339, 0.0
  %v348 = vmax.f32 %v342, 0.0
  %v349 = vmax.f32 %v344, 0.0
  %s350 = scalar_lea.vmem %s6, 12
  %v351 = vld [vmem:[%s350] sm:$0xf]
  %v352 = vld [vmem:[%s350 + $0x4] sm:$0xf]
  %v353 = vld [vmem:[%s350 + $0x8] sm:$0xf]
  %v354 = vpack.c.bf16 %v347, %v346
  %v355 = vpack.c.bf16 %v349, %v348
  %v359 = vunpack.c.l.b16 %v351
  %v360 = vunpack.c.l.b16 %v352
  %v361 = vunpack.c.l.b16 %v353
  %v362 = vpack.c.b16 %v360, %v359
  %v363 = vpack.c.b16 %v361, %v361
  %v365 = vsel %vm140, %v362, 0
  %v368 = vsel %vm140, %v363, 0
  %370 = vmatpush.bf16.msra.mxu0 0
  %371 = vmatpush.bf16.msra.mxu0 0
  %372 = vmatpush.bf16.msra.mxu0 0
  %373 = vmatpush.bf16.msra.mxu0 0
  %374 = vmatpush.bf16.msra.mxu0 0
  %375 = vmatpush.bf16.msra.mxu0 0
  %376 = vmatpush.bf16.msra.mxu0 %v355
  %377 = vmatpush.bf16.msra.mxu0 %v354
  %378 = vmatmul.bf16.gmra.mxu0 %v365
  %v379 = vpop.f32.mrf.mxu0
  %v380 = vadd.f32 0.0, %v379
  %v381 = vpop.f32.mrf.mxu0
  %v382 = vadd.f32 0.0, %v381
  %383 = vmatmul.bf16.gmra.mxu0 %v368
  %v384 = vpop.f32.mrf.mxu0
  %v385 = vadd.f32 0.0, %v384
  %v386 = vpop.f32.mrf.mxu0
  %387 = vdwg.mxu0
  %v388 = vadd.f32 %v204, %v385
  %v389 = vsub.f32 %v207, %v380
  %v390 = vsub.f32 %v208, %v382
  %s391 = scalar_lea.vmem %s1, 64
  %v392 = vld [vmem:[%s391] sm:$0xf]
  %v393 = vld [vmem:[%s391 + $0x4] sm:$0xf]
  %v394 = vld [vmem:[%s391 + $0x8] sm:$0xf]
  %v395 = vld [vmem:[%s391 + $0xc] sm:$0xf]
  %s396 = scalar_lea.vmem %s2, 128
  %v397 = vld [vmem:[%s396] sm:$0xff]
  %v398 = vld [vmem:[%s396 + $0x8] sm:$0xff]
  %v399 = vld [vmem:[%s396 + $0x10] sm:$0xff]
  %v400 = vld [vmem:[%s396 + $0x18] sm:$0xff]
  %v401 = vpack.c.bf16 %v390, %v389
  %403 = vset.pattern.permute.xlu0 0
  %404 = vperm.xlu0 %403, %v397
  %v405 = vpop.permute.xlu0 %404
  %408 = vset.pattern.permute.xlu0 0
  %409 = vperm.xlu0 %408, %v398
  %v410 = vpop.permute.xlu0 %409
  %413 = vset.pattern.permute.xlu0 0
  %414 = vperm.xlu0 %413, %v399
  %v415 = vpop.permute.xlu0 %414
  %418 = vset.pattern.permute.xlu0 0
  %419 = vperm.xlu0 %418, %v400
  %v420 = vpop.permute.xlu0 %419
  %v426 = vunpack.c.l.b16 %v392
  %v427 = vunpack.c.l.b16 %v393
  %v428 = vunpack.c.l.b16 %v394
  %v429 = vunpack.c.l.b16 %v395
  %v430 = vpack.c.b16 %v427, %v426
  %v431 = vpack.c.b16 %v429, %v428
  %v433 = vsel %vm68, %v430, 0
  %v436 = vsel %vm68, %v431, 0
  %438 = vmatpush.bf16.msra.mxu0 0
  %439 = vmatpush.bf16.msra.mxu0 0
  %440 = vmatpush.bf16.msra.mxu0 0
  %441 = vmatpush.bf16.msra.mxu0 0
  %442 = vmatpush.bf16.msra.mxu0 0
  %443 = vmatpush.bf16.msra.mxu0 0
  %444 = vmatpush.bf16.msra.mxu0 0
  %445 = vmatpush.bf16.msra.mxu0 %v401
  %446 = vmatmul.bf16.gmra.mxu0 %v433
  %v447 = vpop.f32.mrf.mxu0
  %v448 = vadd.f32 %v405, %v447
  %v449 = vpop.f32.mrf.mxu0
  %v450 = vadd.f32 %v410, %v449
  %451 = vmatmul.bf16.gmra.mxu0 %v436
  %v452 = vpop.f32.mrf.mxu0
  %v453 = vadd.f32 %v415, %v452
  %v454 = vpop.f32.mrf.mxu0
  %v455 = vadd.f32 %v420, %v454
  %456 = vdwg.mxu0
  %v457 = vmax.f32 %v448, 0.0
  %v458 = vmax.f32 %v450, 0.0
  %v459 = vmax.f32 %v453, 0.0
  %v460 = vmax.f32 %v455, 0.0
  %s461 = scalar_lea.vmem %s1, 80
  %v462 = vld [vmem:[%s461] sm:$0xf]
  %v463 = vld [vmem:[%s461 + $0x4] sm:$0xf]
  %v464 = vld [vmem:[%s461 + $0x8] sm:$0xf]
  %v465 = vld [vmem:[%s461 + $0xc] sm:$0xf]
  %s466 = scalar_lea.vmem %s2, 160
  %v467 = vld [vmem:[%s466] sm:$0xff]
  %v468 = vld [vmem:[%s466 + $0x8] sm:$0xff]
  %v469 = vld [vmem:[%s466 + $0x10] sm:$0xff]
  %v470 = vld [vmem:[%s466 + $0x18] sm:$0xff]
  %v471 = vpack.c.bf16 %v458, %v457
  %v472 = vpack.c.bf16 %v460, %v459
  %474 = vset.pattern.permute.xlu0 0
  %475 = vperm.xlu0 %474, %v467
  %v476 = vpop.permute.xlu0 %475
  %479 = vset.pattern.permute.xlu0 0
  %480 = vperm.xlu0 %479, %v468
  %v481 = vpop.permute.xlu0 %480
  %484 = vset.pattern.permute.xlu0 0
  %485 = vperm.xlu0 %484, %v469
  %v486 = vpop.permute.xlu0 %485
  %489 = vset.pattern.permute.xlu0 0
  %490 = vperm.xlu0 %489, %v470
  %v491 = vpop.permute.xlu0 %490
  %v497 = vunpack.c.l.b16 %v462
  %v498 = vunpack.c.l.b16 %v463
  %v499 = vunpack.c.l.b16 %v464
  %v500 = vunpack.c.l.b16 %v465
  %v501 = vpack.c.b16 %v498, %v497
  %v502 = vpack.c.b16 %v500, %v499
  %v504 = vsel %vm140, %v501, 0
  %v507 = vsel %vm140, %v502, 0
  %509 = vmatpush.bf16.msra.mxu0 0
  %510 = vmatpush.bf16.msra.mxu0 0
  %511 = vmatpush.bf16.msra.mxu0 0
  %512 = vmatpush.bf16.msra.mxu0 0
  %513 = vmatpush.bf16.msra.mxu0 0
  %514 = vmatpush.bf16.msra.mxu0 0
  %515 = vmatpush.bf16.msra.mxu0 %v472
  %516 = vmatpush.bf16.msra.mxu0 %v471
  %517 = vmatmul.bf16.gmra.mxu0 %v504
  %v518 = vpop.f32.mrf.mxu0
  %v519 = vadd.f32 %v476, %v518
  %v520 = vpop.f32.mrf.mxu0
  %v521 = vadd.f32 %v481, %v520
  %522 = vmatmul.bf16.gmra.mxu0 %v507
  %v523 = vpop.f32.mrf.mxu0
  %v524 = vadd.f32 %v486, %v523
  %v525 = vpop.f32.mrf.mxu0
  %v526 = vadd.f32 %v491, %v525
  %527 = vdwg.mxu0
  %v528 = vmax.f32 %v519, 0.0
  %v529 = vmax.f32 %v521, 0.0
  %v530 = vmax.f32 %v524, 0.0
  %v531 = vmax.f32 %v526, 0.0
  %v532 = vld [vmem:[%s3] sm:$0xf]
  %v533 = vpack.c.bf16 %v529, %v528
  %v534 = vpack.c.bf16 %v531, %v530
  %v536 = vsel %vm140, %v532, 0
  %538 = vmatpush.bf16.msra.mxu0 0
  %539 = vmatpush.bf16.msra.mxu0 0
  %540 = vmatpush.bf16.msra.mxu0 0
  %541 = vmatpush.bf16.msra.mxu0 0
  %542 = vmatpush.bf16.msra.mxu0 0
  %543 = vmatpush.bf16.msra.mxu0 0
  %544 = vmatpush.bf16.msra.mxu0 %v534
  %545 = vmatpush.bf16.msra.mxu0 %v533
  %546 = vmatmul.bf16.gmra.mxu0 %v536
  %v547 = vpop.f32.mrf.mxu0
  %v548 = vadd.f32 0.0, %v547
  %v549 = vpop.f32.mrf.mxu0
  %550 = vdwg.mxu0
  %v551 = vmax.f32 %v548, 0.0
  %v552 = vld [vmem:[%s4] sm:$0xf]
  %v553 = vld [vmem:[%s4 + $0x4] sm:$0xf]
  %v554 = vld [vmem:[%s4 + $0x8] sm:$0xf]
  %v555 = vpack.c.bf16 %v551, %v551
  %v556 = vld [vmem:[%s5] sm:$0xff]
  %v557 = vld [vmem:[%s5 + $0x8] sm:$0xff]
  %v558 = vld [vmem:[%s5 + $0x10] sm:$0xff]
  %560 = vset.pattern.permute.xlu0 0
  %561 = vperm.xlu0 %560, %v556
  %v562 = vpop.permute.xlu0 %561
  %564 = vset.pattern.permute.xlu0 0
  %565 = vperm.xlu0 %564, %v557
  %v566 = vpop.permute.xlu0 %565
  %568 = vset.pattern.permute.xlu0 0
  %569 = vperm.xlu0 %568, %v558
  %v570 = vpop.permute.xlu0 %569
  %v575 = vunpack.c.l.b16 %v552
  %v576 = vunpack.c.l.b16 %v553
  %v577 = vunpack.c.l.b16 %v554
  %v578 = vpack.c.b16 %v576, %v575
  %v579 = vpack.c.b16 %v577, %v577
  %vm580 = vcmask 64512
  %v582 = vsel %vm580, %v578, 0
  %v585 = vsel %vm580, %v579, 0
  %vm587 = vcmask 1043456
  %v589 = vsel %vm587, %v555, 0
  %591 = vmatpush.bf16.msra.mxu0 0
  %592 = vmatpush.bf16.msra.mxu0 0
  %593 = vmatpush.bf16.msra.mxu0 0
  %594 = vmatpush.bf16.msra.mxu0 0
  %595 = vmatpush.bf16.msra.mxu0 0
  %596 = vmatpush.bf16.msra.mxu0 0
  %597 = vmatpush.bf16.msra.mxu0 0
  %598 = vmatpush.bf16.msra.mxu0 %v589
  %599 = vmatmul.bf16.gmra.mxu0 %v582
  %v600 = vpop.f32.mrf.mxu0
  %v601 = vpop.f32.mrf.mxu0
  %602 = vmatmul.bf16.gmra.mxu0 %v585
  %v603 = vpop.f32.mrf.mxu0
  %v604 = vadd.f32 %v570, %v603
  %v605 = vpop.f32.mrf.mxu0
  %606 = vdwg.mxu0
  %v607 = vadd.f32 %v388, %v604
  %vm608 = vcmask 15360
  %609 = vst.msk [vmem:[%s7] sm:$0xff] %vm608, %v607
  // Predicated region
  $region30: #{nbeats_prediction_forward_pallas.1} parent=0 // pred_check
    _
  $region31: #{nbeats_prediction_forward_pallas.1} parent=0 // pred_check_branch
    %611 = sbr.rel (0) target = $region33
  $region32: #{nbeats_prediction_forward_pallas.1} parent=0 // pred_region
    _
  $region33: #{nbeats_prediction_forward_pallas.1} parent=0 // pred_fallthru
    _
  // Predicated region
  $region34: #{nbeats_prediction_forward_pallas.1} parent=0 // pred_check
    _
  $region35: #{nbeats_prediction_forward_pallas.1} parent=0 // pred_check_branch
    %613 = sbr.rel (0) target = $region37
  $region36: #{nbeats_prediction_forward_pallas.1} parent=0 // pred_region
    _
  $region37: #{nbeats_prediction_forward_pallas.1} parent=0 // pred_fallthru
    _

</llo_original>
